<compile_context>
chip_gen: v7x
topology: tpu7x:2x2x1
jax: 0.10.0
libtpu: 0.0.40
codegen_flags: <defaults>
</compile_context>

<pallas_src>
import functools

import jax
import jax.numpy as jnp
from jax.experimental import pallas as pl
from jax.experimental.pallas import tpu as pltpu

MAX_NUM_OF_EQ = 11
LANE = 128


def _cond_eq_kernel(sel_ref, cls_ref, out_hbm, wu_ref, wv_ref, buv_ref, wl_ref,
                    bl_ref, o_ref, score_buf, sem, *, seq_len, batch_real, tb,
                    compute_dtype):
    """One grid step processes a (tb)-row batch tile.

    sel_ref  : (B_pad,) int32 in SMEM (scalar prefetch)
    cls_ref  : (tb, H)  f32 VMEM tile
    out_hbm  : (B*S, H) f32 raw HBM ref  (flattened (B,S,H))
    wu_ref   : (H, H)   compute_dtype     wv_ref : (H, H) compute_dtype
    buv_ref  : (1, H)   f32 (bu + bv)
    wl_ref   : (H, 128) compute_dtype     bl_ref : (1, 128) f32 (zero-padded past col 11)
    o_ref    : (tb, 128) f32 output tile
    score_buf: (tb, H)  f32 VMEM scratch (gathered rows)
    sem      : (tb,) DMA semaphores
    """
    i = pl.program_id(0)

    def _issue(j):
        # All scalar SMEM reads happen here, before any .wait().
        b = jnp.minimum(i * tb + j, batch_real - 1)      # clamp padded rows
        s = jnp.clip(sel_ref[b], 0, seq_len - 1)         # clamp bad indices
        row = b * seq_len + s
        pltpu.make_async_copy(out_hbm.at[pl.ds(row, 1), :],
                              score_buf.at[pl.ds(j, 1), :],
                              sem.at[j]).start()

    def _wait(j):
        # Same shapes/semaphore as the issued copy; src index is irrelevant.
        pltpu.make_async_copy(out_hbm.at[pl.ds(0, 1), :],
                              score_buf.at[pl.ds(j, 1), :],
                              sem.at[j]).wait()

    unrolled = tb <= 32  # small tiles: static unroll; large tiles: pl.loop

    # ---- 1) issue all data-dependent row-gather DMAs --------------------------
    if unrolled:
        for j in range(tb):
            _issue(j)
    else:
        @pl.loop(0, tb)
        def _(j):
            _issue(j)

    # ---- 2) cls-half matmul overlaps with the in-flight gather DMAs -----------
    u = jnp.dot(cls_ref[...].astype(compute_dtype), wu_ref[...],
                preferred_element_type=jnp.float32)            # (tb, H) f32

    # ---- 3) wait, then score-half matmul + tanh -------------------------------
    if unrolled:
        for j in range(tb):
            _wait(j)
    else:
        @pl.loop(0, tb)
        def _(j):
            _wait(j)

    v = jnp.dot(score_buf[...].astype(compute_dtype), wv_ref[...],
                preferred_element_type=jnp.float32)            # (tb, H) f32
    h = jnp.tanh(u + v + buv_ref[...])                          # f32
    # TODO(synk): nn.Dropout(0.3) treated as identity (eval/inference mode).

    # ---- 4) final projection, lane-padded to 128 output columns ---------------
    logits = jnp.dot(h.astype(compute_dtype), wl_ref[...],
                     preferred_element_type=jnp.float32) + bl_ref[...]  # (tb, 128)
    o_ref[...] = logits.astype(o_ref.dtype)


def cond_eq_net(sel_cols, cls, out, params, *, tb=None,
                compute_dtype=jnp.float32):
    """sel_cols: (B,) int; cls: (B, H) f32; out: (B, S, H) f32; returns (B, 11) f32."""
    B, S, H = out.shape

    if tb is None:
        # MXU-shaped batch tile: up to 128 rows, multiple of 8 (f32 sublane).
        tb = min(128, ((B + 7) // 8) * 8)
    tb = max(8, (tb // 8) * 8)
    b_pad = ((B + tb - 1) // tb) * tb

    # Weight prep (done once in the wrapper).
    w_u = params["wu"].astype(compute_dtype)                              # (H, H)
    w_v = params["wv"].astype(compute_dtype)                              # (H, H)
    b_uv = (params["bu"] + params["bv"]).reshape(1, H).astype(jnp.float32)
    # Lane-dense final projection (pad 11 -> 128 with zeros).
    w_l = jnp.pad(params["wl"],
                  ((0, 0), (0, LANE - MAX_NUM_OF_EQ))).astype(compute_dtype)   # (H, 128)
    b_l = jnp.pad(params["bl"].reshape(1, MAX_NUM_OF_EQ),
                  ((0, 0), (0, LANE - MAX_NUM_OF_EQ))).astype(jnp.float32)     # (1, 128)

    sel_pad = jnp.zeros((b_pad,), jnp.int32).at[:B].set(sel_cols.astype(jnp.int32))
    cls_pad = jnp.zeros((b_pad, H), jnp.float32).at[:B, :].set(cls.astype(jnp.float32))
    out2d = out.reshape(B * S, H)                                          # free (row-major)

    kernel = functools.partial(_cond_eq_kernel, seq_len=S, batch_real=B,
                               tb=tb, compute_dtype=compute_dtype)

    logits_pad = pl.pallas_call(
        kernel,
        out_shape=jax.ShapeDtypeStruct((b_pad, LANE), jnp.float32),
        grid_spec=pltpu.PrefetchScalarGridSpec(
            num_scalar_prefetch=1,                     # sel_cols -> SMEM
            grid=(b_pad // tb,),
            in_specs=[
                pl.BlockSpec((tb, H), lambda i, sel: (i, 0)),       # cls tile
                pl.BlockSpec(memory_space=pl.ANY),                  # out stays in HBM
                pl.BlockSpec((H, H), lambda i, sel: (0, 0)),        # wu
                pl.BlockSpec((H, H), lambda i, sel: (0, 0)),        # wv
                pl.BlockSpec((1, H), lambda i, sel: (0, 0)),        # bu + bv
                pl.BlockSpec((H, LANE), lambda i, sel: (0, 0)),     # wl (lane-padded)
                pl.BlockSpec((1, LANE), lambda i, sel: (0, 0)),     # bl (lane-padded)
            ],
            out_specs=pl.BlockSpec((tb, LANE), lambda i, sel: (i, 0)),
            scratch_shapes=[
                pltpu.VMEM((tb, H), jnp.float32),      # gathered score rows
                pltpu.SemaphoreType.DMA((tb,)),        # one sem per gather DMA
            ],
        ),
        compiler_params=pltpu.CompilerParams(
            dimension_semantics=("parallel",)),
    )(sel_pad, cls_pad, out2d, w_u, w_v, b_uv, w_l, b_l)

    return logits_pad[:B, :MAX_NUM_OF_EQ]


def _reference(sel_cols, cls, out, params):
    """Pure-JAX reference mirroring the PyTorch forward (eval mode)."""
    score = out[jnp.arange(out.shape[0]), sel_cols, :]
    u = cls @ params["wu"] + params["bu"]
    v = score @ params["wv"] + params["bv"]
    h = jnp.tanh(u + v)
    return h @ params["wl"] + params["bl"]


if __name__ == "__main__":
    # Small, deterministic shapes: batch=4, seq=8, hidden=128 (hidden=768 in the original).
    B, S, H = 4, 8, 128

    key = jax.random.PRNGKey(0)
    k_cls, k_out, k_wu, k_bu, k_wv, k_bv, k_wl, k_bl, k_sel = jax.random.split(key, 9)

    cls = jax.random.normal(k_cls, (B, H), dtype=jnp.float32)
    out = jax.random.normal(k_out, (B, S, H), dtype=jnp.float32)
    sel_cols = jax.random.randint(k_sel, (B,), 0, S, dtype=jnp.int32)

    params = {
        "wu": 0.02 * jax.random.normal(k_wu, (H, H), dtype=jnp.float32),
        "bu": 0.02 * jax.random.normal(k_bu, (1, H), dtype=jnp.float32),
        "wv": 0.02 * jax.random.normal(k_wv, (H, H), dtype=jnp.float32),
        "bv": 0.02 * jax.random.normal(k_bv, (1, H), dtype=jnp.float32),
        "wl": 0.02 * jax.random.normal(k_wl, (H, MAX_NUM_OF_EQ), dtype=jnp.float32),
        "bl": 0.02 * jax.random.normal(k_bl, (1, MAX_NUM_OF_EQ), dtype=jnp.float32),
    }

    ref = _reference(sel_cols, cls, out, params)

    # f32 matmul path (exact-ish vs the f32 reference).
    result = cond_eq_net(sel_cols, cls, out, params)
    jax.block_until_ready(result)
    assert result.shape == (B, MAX_NUM_OF_EQ)
    assert jnp.allclose(result, ref, atol=1e-4, rtol=1e-4), \
        "Pallas kernel (f32) mismatch vs JAX reference"

    # bf16 matmul-operand path (v6e/v7x perf mode): f32 accumulation, looser check.
    result_bf16 = cond_eq_net(sel_cols, cls, out, params,
                              compute_dtype=jnp.bfloat16)
    jax.block_until_ready(result_bf16)
    assert result_bf16.shape == (B, MAX_NUM_OF_EQ)
    assert jnp.allclose(result_bf16, ref, atol=2e-2, rtol=2e-2), \
        "Pallas kernel (bf16 operands) mismatch vs JAX reference"

    print("KERNEL_OK")
</pallas_src>

<mosaic_0001>
module attributes {stable_mosaic.version = 11 : i64} {
  func.func @_cond_eq_kernel(%arg0: i32, %arg1: memref<8xi32, #tpu.memory_space<smem>>, %arg2: memref<8x128xf32, #tpu.memory_space<vmem>>, %arg3: memref<32x128xf32, #tpu.memory_space<any>>, %arg4: memref<128x128xf32, #tpu.memory_space<vmem>>, %arg5: memref<128x128xf32, #tpu.memory_space<vmem>>, %arg6: memref<1x128xf32, #tpu.memory_space<vmem>>, %arg7: memref<128x128xf32, #tpu.memory_space<vmem>>, %arg8: memref<1x128xf32, #tpu.memory_space<vmem>>, %arg9: memref<8x128xf32, #tpu.memory_space<vmem>>, %arg10: memref<8x128xf32, #tpu.memory_space<vmem>>, %arg11: memref<8x!tpu.dma_semaphore, #tpu.memory_space<semaphore_mem>>) attributes {dimension_semantics = [#tpu.dimension_semantics<parallel>], iteration_bounds = array<i64: 1>, scalar_prefetch = 1 : i64, scratch_operands = 2 : i64, tpu.core_type = #tpu.core_type<tc>, window_params = [{transform_indices = @transform_0, window_bounds = array<i64: 8, 128>}, {}, {pipeline_mode = #tpu.pipeline_mode<synchronous>, transform_indices = @transform_2, window_bounds = array<i64: 128, 128>}, {pipeline_mode = #tpu.pipeline_mode<synchronous>, transform_indices = @transform_3, window_bounds = array<i64: 128, 128>}, {pipeline_mode = #tpu.pipeline_mode<synchronous>, transform_indices = @transform_4, window_bounds = array<i64: 1, 128>}, {pipeline_mode = #tpu.pipeline_mode<synchronous>, transform_indices = @transform_5, window_bounds = array<i64: 128, 128>}, {pipeline_mode = #tpu.pipeline_mode<synchronous>, transform_indices = @transform_6, window_bounds = array<i64: 1, 128>}, {transform_indices = @transform_7, window_bounds = array<i64: 8, 128>}]} {
    %c8_i32 = arith.constant 8 : i32
    %0 = arith.muli %arg0, %c8_i32 : i32
    %c0_i32 = arith.constant 0 : i32
    %1 = arith.addi %0, %c0_i32 : i32
    %c3_i32 = arith.constant 3 : i32
    %2 = arith.minsi %1, %c3_i32 : i32
    %3 = arith.index_cast %2 : i32 to index
    %4 = memref.load %arg1[%3] : memref<8xi32, #tpu.memory_space<smem>>
    %c0_i32_0 = arith.constant 0 : i32
    %c7_i32 = arith.constant 7 : i32
    %5 = arith.maxsi %c0_i32_0, %4 : i32
    %6 = arith.minsi %c7_i32, %5 : i32
    %c8_i32_1 = arith.constant 8 : i32
    %7 = arith.muli %2, %c8_i32_1 : i32
    %8 = arith.addi %7, %6 : i32
    %c0_i32_2 = arith.constant 0 : i32
    %c0_i32_3 = arith.constant 0 : i32
    %9 = tpu.memref_slice %arg3[%8, %c0_i32_3] : memref<32x128xf32, #tpu.memory_space<any>> -> memref<1x128xf32, #tpu.memory_space<any>>
    %c0_i32_4 = arith.constant 0 : i32
    %c0_i32_5 = arith.constant 0 : i32
    %10 = tpu.memref_slice %arg10[%c0_i32_4, %c0_i32_5] : memref<8x128xf32, #tpu.memory_space<vmem>> -> memref<1x128xf32, #tpu.memory_space<vmem>>
    %11 = tpu.memref_slice %arg11[%c0_i32_2] : memref<8x!tpu.dma_semaphore, #tpu.memory_space<semaphore_mem>> -> memref<1x!tpu.dma_semaphore, #tpu.memory_space<semaphore_mem>>
    %12 = tpu.memref_squeeze %11 : memref<1x!tpu.dma_semaphore, #tpu.memory_space<semaphore_mem>> -> memref<!tpu.dma_semaphore, #tpu.memory_space<semaphore_mem>>
    tpu.enqueue_dma source(%9 : memref<1x128xf32, #tpu.memory_space<any>>) target(%10 : memref<1x128xf32, #tpu.memory_space<vmem>>) target_semaphore(%12 : memref<!tpu.dma_semaphore, #tpu.memory_space<semaphore_mem>>)
    %c8_i32_6 = arith.constant 8 : i32
    %13 = arith.muli %arg0, %c8_i32_6 : i32
    %c1_i32 = arith.constant 1 : i32
    %14 = arith.addi %13, %c1_i32 : i32
    %c3_i32_7 = arith.constant 3 : i32
    %15 = arith.minsi %14, %c3_i32_7 : i32
    %16 = arith.index_cast %15 : i32 to index
    %17 = memref.load %arg1[%16] : memref<8xi32, #tpu.memory_space<smem>>
    %c0_i32_8 = arith.constant 0 : i32
    %c7_i32_9 = arith.constant 7 : i32
    %18 = arith.maxsi %c0_i32_8, %17 : i32
    %19 = arith.minsi %c7_i32_9, %18 : i32
    %c8_i32_10 = arith.constant 8 : i32
    %20 = arith.muli %15, %c8_i32_10 : i32
    %21 = arith.addi %20, %19 : i32
    %c1_i32_11 = arith.constant 1 : i32
    %c0_i32_12 = arith.constant 0 : i32
    %22 = tpu.memref_slice %arg3[%21, %c0_i32_12] : memref<32x128xf32, #tpu.memory_space<any>> -> memref<1x128xf32, #tpu.memory_space<any>>
    %c1_i32_13 = arith.constant 1 : i32
    %c0_i32_14 = arith.constant 0 : i32
    %23 = tpu.memref_slice %arg10[%c1_i32_13, %c0_i32_14] : memref<8x128xf32, #tpu.memory_space<vmem>> -> memref<1x128xf32, #tpu.memory_space<vmem>>
    %24 = tpu.memref_slice %arg11[%c1_i32_11] : memref<8x!tpu.dma_semaphore, #tpu.memory_space<semaphore_mem>> -> memref<1x!tpu.dma_semaphore, #tpu.memory_space<semaphore_mem>>
    %25 = tpu.memref_squeeze %24 : memref<1x!tpu.dma_semaphore, #tpu.memory_space<semaphore_mem>> -> memref<!tpu.dma_semaphore, #tpu.memory_space<semaphore_mem>>
    tpu.enqueue_dma source(%22 : memref<1x128xf32, #tpu.memory_space<any>>) target(%23 : memref<1x128xf32, #tpu.memory_space<vmem>>) target_semaphore(%25 : memref<!tpu.dma_semaphore, #tpu.memory_space<semaphore_mem>>)
    %c8_i32_15 = arith.constant 8 : i32
    %26 = arith.muli %arg0, %c8_i32_15 : i32
    %c2_i32 = arith.constant 2 : i32
    %27 = arith.addi %26, %c2_i32 : i32
    %c3_i32_16 = arith.constant 3 : i32
    %28 = arith.minsi %27, %c3_i32_16 : i32
    %29 = arith.index_cast %28 : i32 to index
    %30 = memref.load %arg1[%29] : memref<8xi32, #tpu.memory_space<smem>>
    %c0_i32_17 = arith.constant 0 : i32
    %c7_i32_18 = arith.constant 7 : i32
    %31 = arith.maxsi %c0_i32_17, %30 : i32
    %32 = arith.minsi %c7_i32_18, %31 : i32
    %c8_i32_19 = arith.constant 8 : i32
    %33 = arith.muli %28, %c8_i32_19 : i32
    %34 = arith.addi %33, %32 : i32
    %c2_i32_20 = arith.constant 2 : i32
    %c0_i32_21 = arith.constant 0 : i32
    %35 = tpu.memref_slice %arg3[%34, %c0_i32_21] : memref<32x128xf32, #tpu.memory_space<any>> -> memref<1x128xf32, #tpu.memory_space<any>>
    %c2_i32_22 = arith.constant 2 : i32
    %c0_i32_23 = arith.constant 0 : i32
    %36 = tpu.memref_slice %arg10[%c2_i32_22, %c0_i32_23] : memref<8x128xf32, #tpu.memory_space<vmem>> -> memref<1x128xf32, #tpu.memory_space<vmem>>
    %37 = tpu.memref_slice %arg11[%c2_i32_20] : memref<8x!tpu.dma_semaphore, #tpu.memory_space<semaphore_mem>> -> memref<1x!tpu.dma_semaphore, #tpu.memory_space<semaphore_mem>>
    %38 = tpu.memref_squeeze %37 : memref<1x!tpu.dma_semaphore, #tpu.memory_space<semaphore_mem>> -> memref<!tpu.dma_semaphore, #tpu.memory_space<semaphore_mem>>
    tpu.enqueue_dma source(%35 : memref<1x128xf32, #tpu.memory_space<any>>) target(%36 : memref<1x128xf32, #tpu.memory_space<vmem>>) target_semaphore(%38 : memref<!tpu.dma_semaphore, #tpu.memory_space<semaphore_mem>>)
    %c8_i32_24 = arith.constant 8 : i32
    %39 = arith.muli %arg0, %c8_i32_24 : i32
    %c3_i32_25 = arith.constant 3 : i32
    %40 = arith.addi %39, %c3_i32_25 : i32
    %c3_i32_26 = arith.constant 3 : i32
    %41 = arith.minsi %40, %c3_i32_26 : i32
    %42 = arith.index_cast %41 : i32 to index
    %43 = memref.load %arg1[%42] : memref<8xi32, #tpu.memory_space<smem>>
    %c0_i32_27 = arith.constant 0 : i32
    %c7_i32_28 = arith.constant 7 : i32
    %44 = arith.maxsi %c0_i32_27, %43 : i32
    %45 = arith.minsi %c7_i32_28, %44 : i32
    %c8_i32_29 = arith.constant 8 : i32
    %46 = arith.muli %41, %c8_i32_29 : i32
    %47 = arith.addi %46, %45 : i32
    %c3_i32_30 = arith.constant 3 : i32
    %c0_i32_31 = arith.constant 0 : i32
    %48 = tpu.memref_slice %arg3[%47, %c0_i32_31] : memref<32x128xf32, #tpu.memory_space<any>> -> memref<1x128xf32, #tpu.memory_space<any>>
    %c3_i32_32 = arith.constant 3 : i32
    %c0_i32_33 = arith.constant 0 : i32
    %49 = tpu.memref_slice %arg10[%c3_i32_32, %c0_i32_33] : memref<8x128xf32, #tpu.memory_space<vmem>> -> memref<1x128xf32, #tpu.memory_space<vmem>>
    %50 = tpu.memref_slice %arg11[%c3_i32_30] : memref<8x!tpu.dma_semaphore, #tpu.memory_space<semaphore_mem>> -> memref<1x!tpu.dma_semaphore, #tpu.memory_space<semaphore_mem>>
    %51 = tpu.memref_squeeze %50 : memref<1x!tpu.dma_semaphore, #tpu.memory_space<semaphore_mem>> -> memref<!tpu.dma_semaphore, #tpu.memory_space<semaphore_mem>>
    tpu.enqueue_dma source(%48 : memref<1x128xf32, #tpu.memory_space<any>>) target(%49 : memref<1x128xf32, #tpu.memory_space<vmem>>) target_semaphore(%51 : memref<!tpu.dma_semaphore, #tpu.memory_space<semaphore_mem>>)
    %c8_i32_34 = arith.constant 8 : i32
    %52 = arith.muli %arg0, %c8_i32_34 : i32
    %c4_i32 = arith.constant 4 : i32
    %53 = arith.addi %52, %c4_i32 : i32
    %c3_i32_35 = arith.constant 3 : i32
    %54 = arith.minsi %53, %c3_i32_35 : i32
    %55 = arith.index_cast %54 : i32 to index
    %56 = memref.load %arg1[%55] : memref<8xi32, #tpu.memory_space<smem>>
    %c0_i32_36 = arith.constant 0 : i32
    %c7_i32_37 = arith.constant 7 : i32
    %57 = arith.maxsi %c0_i32_36, %56 : i32
    %58 = arith.minsi %c7_i32_37, %57 : i32
    %c8_i32_38 = arith.constant 8 : i32
    %59 = arith.muli %54, %c8_i32_38 : i32
    %60 = arith.addi %59, %58 : i32
    %c4_i32_39 = arith.constant 4 : i32
    %c0_i32_40 = arith.constant 0 : i32
    %61 = tpu.memref_slice %arg3[%60, %c0_i32_40] : memref<32x128xf32, #tpu.memory_space<any>> -> memref<1x128xf32, #tpu.memory_space<any>>
    %c4_i32_41 = arith.constant 4 : i32
    %c0_i32_42 = arith.constant 0 : i32
    %62 = tpu.memref_slice %arg10[%c4_i32_41, %c0_i32_42] : memref<8x128xf32, #tpu.memory_space<vmem>> -> memref<1x128xf32, #tpu.memory_space<vmem>>
    %63 = tpu.memref_slice %arg11[%c4_i32_39] : memref<8x!tpu.dma_semaphore, #tpu.memory_space<semaphore_mem>> -> memref<1x!tpu.dma_semaphore, #tpu.memory_space<semaphore_mem>>
    %64 = tpu.memref_squeeze %63 : memref<1x!tpu.dma_semaphore, #tpu.memory_space<semaphore_mem>> -> memref<!tpu.dma_semaphore, #tpu.memory_space<semaphore_mem>>
    tpu.enqueue_dma source(%61 : memref<1x128xf32, #tpu.memory_space<any>>) target(%62 : memref<1x128xf32, #tpu.memory_space<vmem>>) target_semaphore(%64 : memref<!tpu.dma_semaphore, #tpu.memory_space<semaphore_mem>>)
    %c8_i32_43 = arith.constant 8 : i32
    %65 = arith.muli %arg0, %c8_i32_43 : i32
    %c5_i32 = arith.constant 5 : i32
    %66 = arith.addi %65, %c5_i32 : i32
    %c3_i32_44 = arith.constant 3 : i32
    %67 = arith.minsi %66, %c3_i32_44 : i32
    %68 = arith.index_cast %67 : i32 to index
    %69 = memref.load %arg1[%68] : memref<8xi32, #tpu.memory_space<smem>>
    %c0_i32_45 = arith.constant 0 : i32
    %c7_i32_46 = arith.constant 7 : i32
    %70 = arith.maxsi %c0_i32_45, %69 : i32
    %71 = arith.minsi %c7_i32_46, %70 : i32
    %c8_i32_47 = arith.constant 8 : i32
    %72 = arith.muli %67, %c8_i32_47 : i32
    %73 = arith.addi %72, %71 : i32
    %c5_i32_48 = arith.constant 5 : i32
    %c0_i32_49 = arith.constant 0 : i32
    %74 = tpu.memref_slice %arg3[%73, %c0_i32_49] : memref<32x128xf32, #tpu.memory_space<any>> -> memref<1x128xf32, #tpu.memory_space<any>>
    %c5_i32_50 = arith.constant 5 : i32
    %c0_i32_51 = arith.constant 0 : i32
    %75 = tpu.memref_slice %arg10[%c5_i32_50, %c0_i32_51] : memref<8x128xf32, #tpu.memory_space<vmem>> -> memref<1x128xf32, #tpu.memory_space<vmem>>
    %76 = tpu.memref_slice %arg11[%c5_i32_48] : memref<8x!tpu.dma_semaphore, #tpu.memory_space<semaphore_mem>> -> memref<1x!tpu.dma_semaphore, #tpu.memory_space<semaphore_mem>>
    %77 = tpu.memref_squeeze %76 : memref<1x!tpu.dma_semaphore, #tpu.memory_space<semaphore_mem>> -> memref<!tpu.dma_semaphore, #tpu.memory_space<semaphore_mem>>
    tpu.enqueue_dma source(%74 : memref<1x128xf32, #tpu.memory_space<any>>) target(%75 : memref<1x128xf32, #tpu.memory_space<vmem>>) target_semaphore(%77 : memref<!tpu.dma_semaphore, #tpu.memory_space<semaphore_mem>>)
    %c8_i32_52 = arith.constant 8 : i32
    %78 = arith.muli %arg0, %c8_i32_52 : i32
    %c6_i32 = arith.constant 6 : i32
    %79 = arith.addi %78, %c6_i32 : i32
    %c3_i32_53 = arith.constant 3 : i32
    %80 = arith.minsi %79, %c3_i32_53 : i32
    %81 = arith.index_cast %80 : i32 to index
    %82 = memref.load %arg1[%81] : memref<8xi32, #tpu.memory_space<smem>>
    %c0_i32_54 = arith.constant 0 : i32
    %c7_i32_55 = arith.constant 7 : i32
    %83 = arith.maxsi %c0_i32_54, %82 : i32
    %84 = arith.minsi %c7_i32_55, %83 : i32
    %c8_i32_56 = arith.constant 8 : i32
    %85 = arith.muli %80, %c8_i32_56 : i32
    %86 = arith.addi %85, %84 : i32
    %c6_i32_57 = arith.constant 6 : i32
    %c0_i32_58 = arith.constant 0 : i32
    %87 = tpu.memref_slice %arg3[%86, %c0_i32_58] : memref<32x128xf32, #tpu.memory_space<any>> -> memref<1x128xf32, #tpu.memory_space<any>>
    %c6_i32_59 = arith.constant 6 : i32
    %c0_i32_60 = arith.constant 0 : i32
    %88 = tpu.memref_slice %arg10[%c6_i32_59, %c0_i32_60] : memref<8x128xf32, #tpu.memory_space<vmem>> -> memref<1x128xf32, #tpu.memory_space<vmem>>
    %89 = tpu.memref_slice %arg11[%c6_i32_57] : memref<8x!tpu.dma_semaphore, #tpu.memory_space<semaphore_mem>> -> memref<1x!tpu.dma_semaphore, #tpu.memory_space<semaphore_mem>>
    %90 = tpu.memref_squeeze %89 : memref<1x!tpu.dma_semaphore, #tpu.memory_space<semaphore_mem>> -> memref<!tpu.dma_semaphore, #tpu.memory_space<semaphore_mem>>
    tpu.enqueue_dma source(%87 : memref<1x128xf32, #tpu.memory_space<any>>) target(%88 : memref<1x128xf32, #tpu.memory_space<vmem>>) target_semaphore(%90 : memref<!tpu.dma_semaphore, #tpu.memory_space<semaphore_mem>>)
    %c8_i32_61 = arith.constant 8 : i32
    %91 = arith.muli %arg0, %c8_i32_61 : i32
    %c7_i32_62 = arith.constant 7 : i32
    %92 = arith.addi %91, %c7_i32_62 : i32
    %c3_i32_63 = arith.constant 3 : i32
    %93 = arith.minsi %92, %c3_i32_63 : i32
    %94 = arith.index_cast %93 : i32 to index
    %95 = memref.load %arg1[%94] : memref<8xi32, #tpu.memory_space<smem>>
    %c0_i32_64 = arith.constant 0 : i32
    %c7_i32_65 = arith.constant 7 : i32
    %96 = arith.maxsi %c0_i32_64, %95 : i32
    %97 = arith.minsi %c7_i32_65, %96 : i32
    %c8_i32_66 = arith.constant 8 : i32
    %98 = arith.muli %93, %c8_i32_66 : i32
    %99 = arith.addi %98, %97 : i32
    %c7_i32_67 = arith.constant 7 : i32
    %c0_i32_68 = arith.constant 0 : i32
    %100 = tpu.memref_slice %arg3[%99, %c0_i32_68] : memref<32x128xf32, #tpu.memory_space<any>> -> memref<1x128xf32, #tpu.memory_space<any>>
    %c7_i32_69 = arith.constant 7 : i32
    %c0_i32_70 = arith.constant 0 : i32
    %101 = tpu.memref_slice %arg10[%c7_i32_69, %c0_i32_70] : memref<8x128xf32, #tpu.memory_space<vmem>> -> memref<1x128xf32, #tpu.memory_space<vmem>>
    %102 = tpu.memref_slice %arg11[%c7_i32_67] : memref<8x!tpu.dma_semaphore, #tpu.memory_space<semaphore_mem>> -> memref<1x!tpu.dma_semaphore, #tpu.memory_space<semaphore_mem>>
    %103 = tpu.memref_squeeze %102 : memref<1x!tpu.dma_semaphore, #tpu.memory_space<semaphore_mem>> -> memref<!tpu.dma_semaphore, #tpu.memory_space<semaphore_mem>>
    tpu.enqueue_dma source(%100 : memref<1x128xf32, #tpu.memory_space<any>>) target(%101 : memref<1x128xf32, #tpu.memory_space<vmem>>) target_semaphore(%103 : memref<!tpu.dma_semaphore, #tpu.memory_space<semaphore_mem>>)
    %c0 = arith.constant 0 : index
    %c0_71 = arith.constant 0 : index
    %104 = vector.load %arg2[%c0, %c0_71] : memref<8x128xf32, #tpu.memory_space<vmem>>, vector<8x128xf32>
    %c0_72 = arith.constant 0 : index
    %c0_73 = arith.constant 0 : index
    %105 = vector.load %arg4[%c0_72, %c0_73] : memref<128x128xf32, #tpu.memory_space<vmem>>, vector<128x128xf32>
    %cst = arith.constant dense<0.000000e+00> : vector<8x128xf32>
    %106 = tpu.matmul %104, %105, %cst {dimension_numbers = #tpu.dot_dimension_numbers<[1], [0], [0], [1], [0, 0, 1, 1], [], []>} : vector<8x128xf32>, vector<128x128xf32>, vector<8x128xf32> -> vector<8x128xf32>
    %c0_i32_74 = arith.constant 0 : i32
    %c0_i32_75 = arith.constant 0 : i32
    %c0_i32_76 = arith.constant 0 : i32
    %107 = tpu.memref_slice %arg3[%c0_i32_75, %c0_i32_76] : memref<32x128xf32, #tpu.memory_space<any>> -> memref<1x128xf32, #tpu.memory_space<any>>
    %c0_i32_77 = arith.constant 0 : i32
    %c0_i32_78 = arith.constant 0 : i32
    %108 = tpu.memref_slice %arg10[%c0_i32_77, %c0_i32_78] : memref<8x128xf32, #tpu.memory_space<vmem>> -> memref<1x128xf32, #tpu.memory_space<vmem>>
    %109 = tpu.memref_slice %arg11[%c0_i32_74] : memref<8x!tpu.dma_semaphore, #tpu.memory_space<semaphore_mem>> -> memref<1x!tpu.dma_semaphore, #tpu.memory_space<semaphore_mem>>
    %110 = tpu.memref_squeeze %109 : memref<1x!tpu.dma_semaphore, #tpu.memory_space<semaphore_mem>> -> memref<!tpu.dma_semaphore, #tpu.memory_space<semaphore_mem>>
    tpu.wait_dma2 semaphore(%110 : memref<!tpu.dma_semaphore, #tpu.memory_space<semaphore_mem>>) src(%107 : memref<1x128xf32, #tpu.memory_space<any>>) dst(%108 : memref<1x128xf32, #tpu.memory_space<vmem>>)
    %c1_i32_79 = arith.constant 1 : i32
    %c0_i32_80 = arith.constant 0 : i32
    %c0_i32_81 = arith.constant 0 : i32
    %111 = tpu.memref_slice %arg3[%c0_i32_80, %c0_i32_81] : memref<32x128xf32, #tpu.memory_space<any>> -> memref<1x128xf32, #tpu.memory_space<any>>
    %c1_i32_82 = arith.constant 1 : i32
    %c0_i32_83 = arith.constant 0 : i32
    %112 = tpu.memref_slice %arg10[%c1_i32_82, %c0_i32_83] : memref<8x128xf32, #tpu.memory_space<vmem>> -> memref<1x128xf32, #tpu.memory_space<vmem>>
    %113 = tpu.memref_slice %arg11[%c1_i32_79] : memref<8x!tpu.dma_semaphore, #tpu.memory_space<semaphore_mem>> -> memref<1x!tpu.dma_semaphore, #tpu.memory_space<semaphore_mem>>
    %114 = tpu.memref_squeeze %113 : memref<1x!tpu.dma_semaphore, #tpu.memory_space<semaphore_mem>> -> memref<!tpu.dma_semaphore, #tpu.memory_space<semaphore_mem>>
    tpu.wait_dma2 semaphore(%114 : memref<!tpu.dma_semaphore, #tpu.memory_space<semaphore_mem>>) src(%111 : memref<1x128xf32, #tpu.memory_space<any>>) dst(%112 : memref<1x128xf32, #tpu.memory_space<vmem>>)
    %c2_i32_84 = arith.constant 2 : i32
    %c0_i32_85 = arith.constant 0 : i32
    %c0_i32_86 = arith.constant 0 : i32
    %115 = tpu.memref_slice %arg3[%c0_i32_85, %c0_i32_86] : memref<32x128xf32, #tpu.memory_space<any>> -> memref<1x128xf32, #tpu.memory_space<any>>
    %c2_i32_87 = arith.constant 2 : i32
    %c0_i32_88 = arith.constant 0 : i32
    %116 = tpu.memref_slice %arg10[%c2_i32_87, %c0_i32_88] : memref<8x128xf32, #tpu.memory_space<vmem>> -> memref<1x128xf32, #tpu.memory_space<vmem>>
    %117 = tpu.memref_slice %arg11[%c2_i32_84] : memref<8x!tpu.dma_semaphore, #tpu.memory_space<semaphore_mem>> -> memref<1x!tpu.dma_semaphore, #tpu.memory_space<semaphore_mem>>
    %118 = tpu.memref_squeeze %117 : memref<1x!tpu.dma_semaphore, #tpu.memory_space<semaphore_mem>> -> memref<!tpu.dma_semaphore, #tpu.memory_space<semaphore_mem>>
    tpu.wait_dma2 semaphore(%118 : memref<!tpu.dma_semaphore, #tpu.memory_space<semaphore_mem>>) src(%115 : memref<1x128xf32, #tpu.memory_space<any>>) dst(%116 : memref<1x128xf32, #tpu.memory_space<vmem>>)
    %c3_i32_89 = arith.constant 3 : i32
    %c0_i32_90 = arith.constant 0 : i32
    %c0_i32_91 = arith.constant 0 : i32
    %119 = tpu.memref_slice %arg3[%c0_i32_90, %c0_i32_91] : memref<32x128xf32, #tpu.memory_space<any>> -> memref<1x128xf32, #tpu.memory_space<any>>
    %c3_i32_92 = arith.constant 3 : i32
    %c0_i32_93 = arith.constant 0 : i32
    %120 = tpu.memref_slice %arg10[%c3_i32_92, %c0_i32_93] : memref<8x128xf32, #tpu.memory_space<vmem>> -> memref<1x128xf32, #tpu.memory_space<vmem>>
    %121 = tpu.memref_slice %arg11[%c3_i32_89] : memref<8x!tpu.dma_semaphore, #tpu.memory_space<semaphore_mem>> -> memref<1x!tpu.dma_semaphore, #tpu.memory_space<semaphore_mem>>
    %122 = tpu.memref_squeeze %121 : memref<1x!tpu.dma_semaphore, #tpu.memory_space<semaphore_mem>> -> memref<!tpu.dma_semaphore, #tpu.memory_space<semaphore_mem>>
    tpu.wait_dma2 semaphore(%122 : memref<!tpu.dma_semaphore, #tpu.memory_space<semaphore_mem>>) src(%119 : memref<1x128xf32, #tpu.memory_space<any>>) dst(%120 : memref<1x128xf32, #tpu.memory_space<vmem>>)
    %c4_i32_94 = arith.constant 4 : i32
    %c0_i32_95 = arith.constant 0 : i32
    %c0_i32_96 = arith.constant 0 : i32
    %123 = tpu.memref_slice %arg3[%c0_i32_95, %c0_i32_96] : memref<32x128xf32, #tpu.memory_space<any>> -> memref<1x128xf32, #tpu.memory_space<any>>
    %c4_i32_97 = arith.constant 4 : i32
    %c0_i32_98 = arith.constant 0 : i32
    %124 = tpu.memref_slice %arg10[%c4_i32_97, %c0_i32_98] : memref<8x128xf32, #tpu.memory_space<vmem>> -> memref<1x128xf32, #tpu.memory_space<vmem>>
    %125 = tpu.memref_slice %arg11[%c4_i32_94] : memref<8x!tpu.dma_semaphore, #tpu.memory_space<semaphore_mem>> -> memref<1x!tpu.dma_semaphore, #tpu.memory_space<semaphore_mem>>
    %126 = tpu.memref_squeeze %125 : memref<1x!tpu.dma_semaphore, #tpu.memory_space<semaphore_mem>> -> memref<!tpu.dma_semaphore, #tpu.memory_space<semaphore_mem>>
    tpu.wait_dma2 semaphore(%126 : memref<!tpu.dma_semaphore, #tpu.memory_space<semaphore_mem>>) src(%123 : memref<1x128xf32, #tpu.memory_space<any>>) dst(%124 : memref<1x128xf32, #tpu.memory_space<vmem>>)
    %c5_i32_99 = arith.constant 5 : i32
    %c0_i32_100 = arith.constant 0 : i32
    %c0_i32_101 = arith.constant 0 : i32
    %127 = tpu.memref_slice %arg3[%c0_i32_100, %c0_i32_101] : memref<32x128xf32, #tpu.memory_space<any>> -> memref<1x128xf32, #tpu.memory_space<any>>
    %c5_i32_102 = arith.constant 5 : i32
    %c0_i32_103 = arith.constant 0 : i32
    %128 = tpu.memref_slice %arg10[%c5_i32_102, %c0_i32_103] : memref<8x128xf32, #tpu.memory_space<vmem>> -> memref<1x128xf32, #tpu.memory_space<vmem>>
    %129 = tpu.memref_slice %arg11[%c5_i32_99] : memref<8x!tpu.dma_semaphore, #tpu.memory_space<semaphore_mem>> -> memref<1x!tpu.dma_semaphore, #tpu.memory_space<semaphore_mem>>
    %130 = tpu.memref_squeeze %129 : memref<1x!tpu.dma_semaphore, #tpu.memory_space<semaphore_mem>> -> memref<!tpu.dma_semaphore, #tpu.memory_space<semaphore_mem>>
    tpu.wait_dma2 semaphore(%130 : memref<!tpu.dma_semaphore, #tpu.memory_space<semaphore_mem>>) src(%127 : memref<1x128xf32, #tpu.memory_space<any>>) dst(%128 : memref<1x128xf32, #tpu.memory_space<vmem>>)
    %c6_i32_104 = arith.constant 6 : i32
    %c0_i32_105 = arith.constant 0 : i32
    %c0_i32_106 = arith.constant 0 : i32
    %131 = tpu.memref_slice %arg3[%c0_i32_105, %c0_i32_106] : memref<32x128xf32, #tpu.memory_space<any>> -> memref<1x128xf32, #tpu.memory_space<any>>
    %c6_i32_107 = arith.constant 6 : i32
    %c0_i32_108 = arith.constant 0 : i32
    %132 = tpu.memref_slice %arg10[%c6_i32_107, %c0_i32_108] : memref<8x128xf32, #tpu.memory_space<vmem>> -> memref<1x128xf32, #tpu.memory_space<vmem>>
    %133 = tpu.memref_slice %arg11[%c6_i32_104] : memref<8x!tpu.dma_semaphore, #tpu.memory_space<semaphore_mem>> -> memref<1x!tpu.dma_semaphore, #tpu.memory_space<semaphore_mem>>
    %134 = tpu.memref_squeeze %133 : memref<1x!tpu.dma_semaphore, #tpu.memory_space<semaphore_mem>> -> memref<!tpu.dma_semaphore, #tpu.memory_space<semaphore_mem>>
    tpu.wait_dma2 semaphore(%134 : memref<!tpu.dma_semaphore, #tpu.memory_space<semaphore_mem>>) src(%131 : memref<1x128xf32, #tpu.memory_space<any>>) dst(%132 : memref<1x128xf32, #tpu.memory_space<vmem>>)
    %c7_i32_109 = arith.constant 7 : i32
    %c0_i32_110 = arith.constant 0 : i32
    %c0_i32_111 = arith.constant 0 : i32
    %135 = tpu.memref_slice %arg3[%c0_i32_110, %c0_i32_111] : memref<32x128xf32, #tpu.memory_space<any>> -> memref<1x128xf32, #tpu.memory_space<any>>
    %c7_i32_112 = arith.constant 7 : i32
    %c0_i32_113 = arith.constant 0 : i32
    %136 = tpu.memref_slice %arg10[%c7_i32_112, %c0_i32_113] : memref<8x128xf32, #tpu.memory_space<vmem>> -> memref<1x128xf32, #tpu.memory_space<vmem>>
    %137 = tpu.memref_slice %arg11[%c7_i32_109] : memref<8x!tpu.dma_semaphore, #tpu.memory_space<semaphore_mem>> -> memref<1x!tpu.dma_semaphore, #tpu.memory_space<semaphore_mem>>
    %138 = tpu.memref_squeeze %137 : memref<1x!tpu.dma_semaphore, #tpu.memory_space<semaphore_mem>> -> memref<!tpu.dma_semaphore, #tpu.memory_space<semaphore_mem>>
    tpu.wait_dma2 semaphore(%138 : memref<!tpu.dma_semaphore, #tpu.memory_space<semaphore_mem>>) src(%135 : memref<1x128xf32, #tpu.memory_space<any>>) dst(%136 : memref<1x128xf32, #tpu.memory_space<vmem>>)
    %c0_114 = arith.constant 0 : index
    %c0_115 = arith.constant 0 : index
    %139 = vector.load %arg10[%c0_114, %c0_115] : memref<8x128xf32, #tpu.memory_space<vmem>>, vector<8x128xf32>
    %c0_116 = arith.constant 0 : index
    %c0_117 = arith.constant 0 : index
    %140 = vector.load %arg5[%c0_116, %c0_117] : memref<128x128xf32, #tpu.memory_space<vmem>>, vector<128x128xf32>
    %cst_118 = arith.constant dense<0.000000e+00> : vector<8x128xf32>
    %141 = tpu.matmul %139, %140, %cst_118 {dimension_numbers = #tpu.dot_dimension_numbers<[1], [0], [0], [1], [0, 0, 1, 1], [], []>} : vector<8x128xf32>, vector<128x128xf32>, vector<8x128xf32> -> vector<8x128xf32>
    %142 = arith.addf %106, %141 : vector<8x128xf32>
    %c0_119 = arith.constant 0 : index
    %c0_120 = arith.constant 0 : index
    %143 = vector.load %arg6[%c0_119, %c0_120] : memref<1x128xf32, #tpu.memory_space<vmem>>, vector<1x128xf32>
    %144 = vector.broadcast %143 : vector<1x128xf32> to vector<8x128xf32>
    %145 = arith.addf %142, %144 : vector<8x128xf32>
    %146 = math.tanh %145 : vector<8x128xf32>
    %c0_121 = arith.constant 0 : index
    %c0_122 = arith.constant 0 : index
    %147 = vector.load %arg7[%c0_121, %c0_122] : memref<128x128xf32, #tpu.memory_space<vmem>>, vector<128x128xf32>
    %cst_123 = arith.constant dense<0.000000e+00> : vector<8x128xf32>
    %148 = tpu.matmul %146, %147, %cst_123 {dimension_numbers = #tpu.dot_dimension_numbers<[1], [0], [0], [1], [0, 0, 1, 1], [], []>} : vector<8x128xf32>, vector<128x128xf32>, vector<8x128xf32> -> vector<8x128xf32>
    %c0_124 = arith.constant 0 : index
    %c0_125 = arith.constant 0 : index
    %149 = vector.load %arg8[%c0_124, %c0_125] : memref<1x128xf32, #tpu.memory_space<vmem>>, vector<1x128xf32>
    %150 = vector.broadcast %149 : vector<1x128xf32> to vector<8x128xf32>
    %151 = arith.addf %148, %150 : vector<8x128xf32>
    %c0_126 = arith.constant 0 : index
    %c0_127 = arith.constant 0 : index
    %152 = vector.load %arg9[%c0_126, %c0_127] : memref<8x128xf32, #tpu.memory_space<vmem>>, vector<8x128xf32>
    tpu.vector_store %arg9[%c0_126, %c0_127], %151 {strides = array<i32>} : memref<8x128xf32, #tpu.memory_space<vmem>>, vector<8x128xf32>,
    return
  }
  func.func @transform_0(%arg0: i32, %arg1: memref<8xi32, #tpu.memory_space<smem>>) -> (i32, i32) {
    %c0_i32 = arith.constant 0 : i32
    %c0_i32_0 = arith.constant 0 : i32
    return %arg0, %c0_i32 : i32, i32
  }
  func.func @transform_2(%arg0: i32, %arg1: memref<8xi32, #tpu.memory_space<smem>>) -> (i32, i32) {
    %c0_i32 = arith.constant 0 : i32
    %c0_i32_0 = arith.constant 0 : i32
    %c0_i32_1 = arith.constant 0 : i32
    return %c0_i32, %c0_i32_0 : i32, i32
  }
  func.func @transform_3(%arg0: i32, %arg1: memref<8xi32, #tpu.memory_space<smem>>) -> (i32, i32) {
    %c0_i32 = arith.constant 0 : i32
    %c0_i32_0 = arith.constant 0 : i32
    %c0_i32_1 = arith.constant 0 : i32
    return %c0_i32, %c0_i32_0 : i32, i32
  }
  func.func @transform_4(%arg0: i32, %arg1: memref<8xi32, #tpu.memory_space<smem>>) -> (i32, i32) {
    %c0_i32 = arith.constant 0 : i32
    %c0_i32_0 = arith.constant 0 : i32
    %c0_i32_1 = arith.constant 0 : i32
    return %c0_i32, %c0_i32_0 : i32, i32
  }
  func.func @transform_5(%arg0: i32, %arg1: memref<8xi32, #tpu.memory_space<smem>>) -> (i32, i32) {
    %c0_i32 = arith.constant 0 : i32
    %c0_i32_0 = arith.constant 0 : i32
    %c0_i32_1 = arith.constant 0 : i32
    return %c0_i32, %c0_i32_0 : i32, i32
  }
  func.func @transform_6(%arg0: i32, %arg1: memref<8xi32, #tpu.memory_space<smem>>) -> (i32, i32) {
    %c0_i32 = arith.constant 0 : i32
    %c0_i32_0 = arith.constant 0 : i32
    %c0_i32_1 = arith.constant 0 : i32
    return %c0_i32, %c0_i32_0 : i32, i32
  }
  func.func @transform_7(%arg0: i32, %arg1: memref<8xi32, #tpu.memory_space<smem>>) -> (i32, i32) {
    %c0_i32 = arith.constant 0 : i32
    %c0_i32_0 = arith.constant 0 : i32
    return %arg0, %c0_i32 : i32, i32
  }
}

</mosaic_0001>

<llo_original>
// kernel: tpu_custom_call.1
$region0: #{tpu_custom_call.1}
  #allocation0 [shape = 'u32[]', space=smem, size = 0x4, offset = 0x4, fixed_abs, tag = 'smem constant byte address 0x4 - core index']
  #allocation1 [shape = 'u32[144,128]{1,0:T(1,128)}', space=vmem, size = 0x12000, scoped, tag = 'internal scratch']
  #allocation2 [shape = 'f32[8,128]{1,0:T(8,128)}', space=vmem, size = 0x1000, scoped, tag = 'scratch operand']
  #allocation3 [shape = 's32[8]{0}', space=sflag, size = 0x20, scoped, tag = 'scratch operand']
  #allocation4 [shape = 's32[1]{0}', space=sflag, size = 0x4, scoped, tag = 'scoped memory for tpu_custom_call.1']
  #allocation5 [shape = 'u8[512]{0}', space=smem, size = 0x200, scoped, tag = 'prefetched SMEM operand 0']
  #allocation15 [shape = 's32[]', space=sflag, size = 0x4, offset = 0, fixed_abs, tag = 'sflag constant byte address 0x0 - dummy sync flag']
  #allocation16 [shape = 's32[]', space=sflag, size = 0x4, offset = 0, fixed_abs, tag = 'sflag constant byte address 0x0 - dummy sync flag']
  #allocation17 [shape = 'u32[]', space=smem, size = 0x4, offset = 0x44, fixed_abs, tag = 'smem constant byte address 0x44 - assertion arg 0']
  #allocation18 [shape = 'u32[]', space=smem, size = 0x4, offset = 0x48, fixed_abs, tag = 'smem constant byte address 0x48 - assertion arg 1']
  #allocation19 [shape = 's32[]', space=sflag, size = 0x4, offset = 0, fixed_abs, tag = 'sflag constant byte address 0x0 - dummy sync flag']
  #allocation20 [shape = 's32[]', space=sflag, size = 0x4, offset = 0, fixed_abs, tag = 'sflag constant byte address 0x0 - dummy sync flag']
  #allocation21 [shape = 's32[]', space=sflag, size = 0x4, offset = 0, fixed_abs, tag = 'sflag constant byte address 0x0 - dummy sync flag']
  #allocation22 [shape = 's32[]', space=sflag, size = 0x4, offset = 0, fixed_abs, tag = 'sflag constant byte address 0x0 - dummy sync flag']
  #allocation23 [shape = 's32[]', space=sflag, size = 0x4, offset = 0, fixed_abs, tag = 'sflag constant byte address 0x0 - dummy sync flag']
  #allocation24 [shape = 's32[]', space=sflag, size = 0x4, offset = 0, fixed_abs, tag = 'sflag constant byte address 0x0 - dummy sync flag']
  #allocation25 [shape = 's32[]', space=sflag, size = 0x4, offset = 0, fixed_abs, tag = 'sflag constant byte address 0x0 - dummy sync flag']
  #allocation26 [shape = 's32[]', space=sflag, size = 0x4, offset = 0, fixed_abs, tag = 'sflag constant byte address 0x0 - dummy sync flag']
  #allocation27 [shape = 's32[]', space=sflag, size = 0x4, offset = 0, fixed_abs, tag = 'sflag constant byte address 0x0 - dummy sync flag']
  #allocation28 [shape = 's32[]', space=sflag, size = 0x4, offset = 0, fixed_abs, tag = 'sflag constant byte address 0x0 - dummy sync flag']
  #allocation29 [shape = 's32[]', space=sflag, size = 0x4, offset = 0, fixed_abs, tag = 'sflag constant byte address 0x0 - dummy sync flag']
  #allocation30 [shape = 's32[]', space=sflag, size = 0x4, offset = 0, fixed_abs, tag = 'sflag constant byte address 0x0 - dummy sync flag']
  #allocation31 [shape = 's32[]', space=sflag, size = 0x4, offset = 0, fixed_abs, tag = 'sflag constant byte address 0x0 - dummy sync flag']
  #allocation32 [shape = 's32[]', space=sflag, size = 0x4, offset = 0, fixed_abs, tag = 'sflag constant byte address 0x0 - dummy sync flag']
  %s0 = inlined_call_operand.hbm [shape: s32[8], index: 0, kind: input, shape index: {}]
  %s1 = inlined_call_operand.hbm [shape: f32[8,128], index: 1, kind: input, shape index: {}]
  %s2 = inlined_call_operand.hbm [shape: f32[32,128], index: 2, kind: input, shape index: {}]
  %s3 = inlined_call_operand.hbm [shape: f32[128,128], index: 3, kind: input, shape index: {}]
  %s4 = inlined_call_operand.hbm [shape: f32[128,128], index: 4, kind: input, shape index: {}]
  %s5 = inlined_call_operand.vmem [shape: f32[1,128], index: 5, kind: input, shape index: {}]
  %s6 = inlined_call_operand.hbm [shape: f32[128,128], index: 6, kind: input, shape index: {}]
  %s7 = inlined_call_operand.vmem [shape: f32[1,128], index: 7, kind: input, shape index: {}]
  %s8 = inlined_call_operand.hbm [shape: f32[8,128], index: 8, kind: output, shape index: {}]
  %s9 = sld [smem:[#allocation0]]
  $region82: #{tpu_custom_call.1} parent=0
    _
  %s11 = ssub.s32 1, %s9
  %s12 = scalar_select 0, %s11, %s9
  %14 = dma.hbm_to_smem %s0, 16, [#allocation5], [#allocation4]
  %15 = dma.done [#allocation4], 16
  %16 = sfence
  $region1: #{tpu_custom_call.1} parent=0
    #allocation6 [shape = 'u8[4096]{0}', space=vmem, size = 0x1000, scoped, tag = 'input window, operand 1, single buffered']
    #allocation7 [shape = 's32[1]{0}', space=sflag, size = 0x4, scoped, tag = 'scoped memory for tpu_custom_call.1']
    #allocation8 [shape = 's32[1]{0}', space=sflag, size = 0x4, scoped, tag = 'scoped memory for tpu_custom_call.1']
    #allocation9 [shape = 'u8[65536]{0}', space=vmem, size = 0x10000, scoped, tag = 'input window, operand 3, single buffered']
    #allocation10 [shape = 's32[1]{0}', space=sflag, size = 0x4, scoped, tag = 'scoped memory for tpu_custom_call.1']
    #allocation11 [shape = 'u8[65536]{0}', space=vmem, size = 0x10000, scoped, tag = 'input window, operand 4, single buffered']
    #allocation12 [shape = 'u8[65536]{0}', space=vmem, size = 0x10000, scoped, tag = 'input window, operand 6, single buffered']
    #allocation13 [shape = 's32[1]{0}', space=sflag, size = 0x4, scoped, tag = 'scoped memory for tpu_custom_call.1']
    #allocation14 [shape = 'u8[4096]{0}', space=vmem, size = 0x1000, scoped, tag = 'output window, operand 0, single buffered']
    %17 = vsyncpa [#allocation7], 0
    %18 = vsyncpa [#allocation10], 0
    %19 = vsyncpa [#allocation13], 0
    %20 = vsyncpa [#allocation8], 0
    // Predicated region
    $region2: #{tpu_custom_call.1} parent=1 // pred_check
      _
    $region3: #{tpu_custom_call.1} parent=1 // pred_check_branch
      %22 = sbr.rel (0) target = $region5
    $region4: #{tpu_custom_call.1} parent=1 // pred_region
      %s24 = ssub.s32 128, 128
      %25 = vsyncadd [#allocation7], %s24
      %s27 = sshll.u32 [#allocation6], 4
      %s28 = int_to_ptr.vmem [resolvable:$true] %s27
      %30 = dma.hbm_to_vmem [thread:$0]  %s1, 128, %s28, [#allocation7]
    $region5: #{tpu_custom_call.1} parent=1 // pred_fallthru
      _
    // Predicated region
    $region6: #{tpu_custom_call.1} parent=1 // pred_check
      _
    $region7: #{tpu_custom_call.1} parent=1 // pred_check_branch
      %32 = sbr.rel (0) target = $region9
    $region8: #{tpu_custom_call.1} parent=1 // pred_region
      %s34 = ssub.s32 2048, 2048
      %35 = vsyncadd [#allocation10], %s34
      %s36 = sshll.u32 [#allocation9], 4
      %s37 = int_to_ptr.vmem [resolvable:$true] %s36
      %42 = dma.hbm_to_vmem [thread:$0]  %s3, 2048, %s37, [#allocation10], 128, 128, 8
    $region9: #{tpu_custom_call.1} parent=1 // pred_fallthru
      _
    // Predicated region
    $region10: #{tpu_custom_call.1} parent=1 // pred_check
      _
    $region11: #{tpu_custom_call.1} parent=1 // pred_check_branch
      %44 = sbr.rel (0) target = $region13
    $region12: #{tpu_custom_call.1} parent=1 // pred_region
      %s46 = ssub.s32 2048, 2048
      %47 = vsyncadd [#allocation10], %s46
      %s48 = sshll.u32 [#allocation11], 4
      %s49 = int_to_ptr.vmem [resolvable:$true] %s48
      %54 = dma.hbm_to_vmem [thread:$0]  %s4, 2048, %s49, [#allocation10], 128, 128, 8
    $region13: #{tpu_custom_call.1} parent=1 // pred_fallthru
      _
    // Predicated region
    $region14: #{tpu_custom_call.1} parent=1 // pred_check
      _
    $region15: #{tpu_custom_call.1} parent=1 // pred_check_branch
      %56 = sbr.rel (0) target = $region17
    $region16: #{tpu_custom_call.1} parent=1 // pred_region
      _
    $region17: #{tpu_custom_call.1} parent=1 // pred_fallthru
      _
    // Predicated region
    $region18: #{tpu_custom_call.1} parent=1 // pred_check
      _
    $region19: #{tpu_custom_call.1} parent=1 // pred_check_branch
      %58 = sbr.rel (0) target = $region21
    $region20: #{tpu_custom_call.1} parent=1 // pred_region
      %s60 = ssub.s32 2048, 2048
      %61 = vsyncadd [#allocation13], %s60
      %s62 = sshll.u32 [#allocation12], 4
      %s63 = int_to_ptr.vmem [resolvable:$true] %s62
      %68 = dma.hbm_to_vmem [thread:$0]  %s6, 2048, %s63, [#allocation13], 128, 128, 8
    $region21: #{tpu_custom_call.1} parent=1 // pred_fallthru
      _
    // Predicated region
    $region22: #{tpu_custom_call.1} parent=1 // pred_check
      _
    $region23: #{tpu_custom_call.1} parent=1 // pred_check_branch
      %70 = sbr.rel (0) target = $region25
    $region24: #{tpu_custom_call.1} parent=1 // pred_region
      _
    $region25: #{tpu_custom_call.1} parent=1 // pred_fallthru
      _
    // Predicated region
    $region26: #{tpu_custom_call.1} parent=1 // pred_check
      _
    $region27: #{tpu_custom_call.1} parent=1 // pred_check_branch
      %72 = sbr.rel (0) target = $region29
    $region28: #{tpu_custom_call.1} parent=1 // pred_region
      %73 = dma.done [#allocation7], 128
    $region29: #{tpu_custom_call.1} parent=1 // pred_fallthru
      _
    // Predicated region
    $region30: #{tpu_custom_call.1} parent=1 // pred_check
      _
    $region31: #{tpu_custom_call.1} parent=1 // pred_check_branch
      %75 = sbr.rel (0) target = $region33
    $region32: #{tpu_custom_call.1} parent=1 // pred_region
      %76 = dma.done [#allocation10], 2048
    $region33: #{tpu_custom_call.1} parent=1 // pred_fallthru
      _
    // Predicated region
    $region34: #{tpu_custom_call.1} parent=1 // pred_check
      _
    $region35: #{tpu_custom_call.1} parent=1 // pred_check_branch
      %78 = sbr.rel (0) target = $region37
    $region36: #{tpu_custom_call.1} parent=1 // pred_region
      %79 = dma.done [#allocation10], 2048
    $region37: #{tpu_custom_call.1} parent=1 // pred_fallthru
      _
    // Predicated region
    $region38: #{tpu_custom_call.1} parent=1 // pred_check
      _
    $region39: #{tpu_custom_call.1} parent=1 // pred_check_branch
      %81 = sbr.rel (0) target = $region41
    $region40: #{tpu_custom_call.1} parent=1 // pred_region
      %82 = dma.done [#allocation13], 2048
    $region41: #{tpu_custom_call.1} parent=1 // pred_fallthru
      _
    %s83 = smul.u32 0, 8
    %p84 = scmp.lt.s32.totalorder %s83, 3
    %s85 = scalar_select %p84, %s83, 3
    %s86 = sld [smem:[#allocation5 + %s85]]
    %p87 = scmp.gt.s32.totalorder %s86, 0
    %s88 = scalar_select %p87, %s86, 0
    %p89 = scmp.lt.s32.totalorder %s88, 7
    %s90 = scalar_select %p89, %s88, 7
    %s91 = smul.u32 %s85, 8
    %s92 = sadd.s32 %s91, %s90
    %s93 = smul.addr %s92, 16
    %s94 = scalar_lea.hbm %s2, %s93
    // Predicated region
    $region42: #{tpu_custom_call.1} parent=1 // pred_check
      _
    $region43: #{tpu_custom_call.1} parent=1 // pred_check_branch
      %96 = sbr.rel target = $region45
    $region44: #{tpu_custom_call.1} parent=1 // pred_region
      %97 = sst [smem:[#allocation17]] [#allocation16]
      %98 = sst [smem:[#allocation18]] [#allocation15]
    $region45: #{tpu_custom_call.1} parent=1 // pred_fallthru
      _
    %100 = shalt.err (0)
    %s102 = sshll.u32 [#allocation2], 4
    %s103 = int_to_ptr.vmem [resolvable:$true] %s102
    %105 = dma.hbm_to_vmem [thread:$0]  %s94, 16, %s103, [#allocation3]
    %s106 = sadd.s32 %s83, 1
    %p107 = scmp.lt.s32.totalorder %s106, 3
    %s108 = scalar_select %p107, %s106, 3
    %s109 = sld [smem:[#allocation5 + %s108]]
    %p110 = scmp.gt.s32.totalorder %s109, 0
    %s111 = scalar_select %p110, %s109, 0
    %p112 = scmp.lt.s32.totalorder %s111, 7
    %s113 = scalar_select %p112, %s111, 7
    %s114 = smul.u32 %s108, 8
    %s115 = sadd.s32 %s114, %s113
    %s116 = smul.addr %s115, 16
    %s117 = scalar_lea.hbm %s2, %s116
    %s118 = scalar_lea.vmem [#allocation2], 1
    %s119 = scalar_lea.sflag [#allocation3], 1
    // Predicated region
    $region46: #{tpu_custom_call.1} parent=1 // pred_check
      _
    $region47: #{tpu_custom_call.1} parent=1 // pred_check_branch
      %121 = sbr.rel target = $region49
    $region48: #{tpu_custom_call.1} parent=1 // pred_region
      %122 = sst [smem:[#allocation17]] [#allocation20]
      %123 = sst [smem:[#allocation18]] [#allocation19]
    $region49: #{tpu_custom_call.1} parent=1 // pred_fallthru
      _
    %125 = shalt.err (0)
    %s127 = sshll.u32 %s118, 4
    %s128 = int_to_ptr.vmem [resolvable:$true] %s127
    %130 = dma.hbm_to_vmem [thread:$0]  %s117, 16, %s128, %s119
    %s131 = sadd.s32 %s83, 2
    %p132 = scmp.lt.s32.totalorder %s131, 3
    %s133 = scalar_select %p132, %s131, 3
    %s134 = sld [smem:[#allocation5 + %s133]]
    %p135 = scmp.gt.s32.totalorder %s134, 0
    %s136 = scalar_select %p135, %s134, 0
    %p137 = scmp.lt.s32.totalorder %s136, 7
    %s138 = scalar_select %p137, %s136, 7
    %s139 = smul.u32 %s133, 8
    %s140 = sadd.s32 %s139, %s138
    %s141 = smul.addr %s140, 16
    %s142 = scalar_lea.hbm %s2, %s141
    %s143 = scalar_lea.vmem [#allocation2], 2
    %s144 = scalar_lea.sflag [#allocation3], 2
    // Predicated region
    $region50: #{tpu_custom_call.1} parent=1 // pred_check
      _
    $region51: #{tpu_custom_call.1} parent=1 // pred_check_branch
      %146 = sbr.rel target = $region53
    $region52: #{tpu_custom_call.1} parent=1 // pred_region
      %147 = sst [smem:[#allocation17]] [#allocation22]
      %148 = sst [smem:[#allocation18]] [#allocation21]
    $region53: #{tpu_custom_call.1} parent=1 // pred_fallthru
      _
    %150 = shalt.err (0)
    %s152 = sshll.u32 %s143, 4
    %s153 = int_to_ptr.vmem [resolvable:$true] %s152
    %155 = dma.hbm_to_vmem [thread:$0]  %s142, 16, %s153, %s144
    %s156 = sadd.s32 %s83, 3
    %p157 = scmp.lt.s32.totalorder %s156, 3
    %s158 = scalar_select %p157, %s156, 3
    %s159 = sld [smem:[#allocation5 + %s158]]
    %p160 = scmp.gt.s32.totalorder %s159, 0
    %s161 = scalar_select %p160, %s159, 0
    %p162 = scmp.lt.s32.totalorder %s161, 7
    %s163 = scalar_select %p162, %s161, 7
    %s164 = smul.u32 %s158, 8
    %s165 = sadd.s32 %s164, %s163
    %s166 = smul.addr %s165, 16
    %s167 = scalar_lea.hbm %s2, %s166
    %s168 = scalar_lea.vmem [#allocation2], 3
    %s169 = scalar_lea.sflag [#allocation3], 3
    // Predicated region
    $region54: #{tpu_custom_call.1} parent=1 // pred_check
      _
    $region55: #{tpu_custom_call.1} parent=1 // pred_check_branch
      %171 = sbr.rel target = $region57
    $region56: #{tpu_custom_call.1} parent=1 // pred_region
      %172 = sst [smem:[#allocation17]] [#allocation24]
      %173 = sst [smem:[#allocation18]] [#allocation23]
    $region57: #{tpu_custom_call.1} parent=1 // pred_fallthru
      _
    %175 = shalt.err (0)
    %s177 = sshll.u32 %s168, 4
    %s178 = int_to_ptr.vmem [resolvable:$true] %s177
    %180 = dma.hbm_to_vmem [thread:$0]  %s167, 16, %s178, %s169
    %s181 = sadd.s32 %s83, 4
    %p182 = scmp.lt.s32.totalorder %s181, 3
    %s183 = scalar_select %p182, %s181, 3
    %s184 = sld [smem:[#allocation5 + %s183]]
    %p185 = scmp.gt.s32.totalorder %s184, 0
    %s186 = scalar_select %p185, %s184, 0
    %p187 = scmp.lt.s32.totalorder %s186, 7
    %s188 = scalar_select %p187, %s186, 7
    %s189 = smul.u32 %s183, 8
    %s190 = sadd.s32 %s189, %s188
    %s191 = smul.addr %s190, 16
    %s192 = scalar_lea.hbm %s2, %s191
    %s193 = scalar_lea.vmem [#allocation2], 4
    %s194 = scalar_lea.sflag [#allocation3], 4
    // Predicated region
    $region58: #{tpu_custom_call.1} parent=1 // pred_check
      _
    $region59: #{tpu_custom_call.1} parent=1 // pred_check_branch
      %196 = sbr.rel target = $region61
    $region60: #{tpu_custom_call.1} parent=1 // pred_region
      %197 = sst [smem:[#allocation17]] [#allocation26]
      %198 = sst [smem:[#allocation18]] [#allocation25]
    $region61: #{tpu_custom_call.1} parent=1 // pred_fallthru
      _
    %200 = shalt.err (0)
    %s202 = sshll.u32 %s193, 4
    %s203 = int_to_ptr.vmem [resolvable:$true] %s202
    %205 = dma.hbm_to_vmem [thread:$0]  %s192, 16, %s203, %s194
    %s206 = sadd.s32 %s83, 5
    %p207 = scmp.lt.s32.totalorder %s206, 3
    %s208 = scalar_select %p207, %s206, 3
    %s209 = sld [smem:[#allocation5 + %s208]]
    %p210 = scmp.gt.s32.totalorder %s209, 0
    %s211 = scalar_select %p210, %s209, 0
    %p212 = scmp.lt.s32.totalorder %s211, 7
    %s213 = scalar_select %p212, %s211, 7
    %s214 = smul.u32 %s208, 8
    %s215 = sadd.s32 %s214, %s213
    %s216 = smul.addr %s215, 16
    %s217 = scalar_lea.hbm %s2, %s216
    %s218 = scalar_lea.vmem [#allocation2], 5
    %s219 = scalar_lea.sflag [#allocation3], 5
    // Predicated region
    $region62: #{tpu_custom_call.1} parent=1 // pred_check
      _
    $region63: #{tpu_custom_call.1} parent=1 // pred_check_branch
      %221 = sbr.rel target = $region65
    $region64: #{tpu_custom_call.1} parent=1 // pred_region
      %222 = sst [smem:[#allocation17]] [#allocation28]
      %223 = sst [smem:[#allocation18]] [#allocation27]
    $region65: #{tpu_custom_call.1} parent=1 // pred_fallthru
      _
    %225 = shalt.err (0)
    %s227 = sshll.u32 %s218, 4
    %s228 = int_to_ptr.vmem [resolvable:$true] %s227
    %230 = dma.hbm_to_vmem [thread:$0]  %s217, 16, %s228, %s219
    %s231 = sadd.s32 %s83, 6
    %p232 = scmp.lt.s32.totalorder %s231, 3
    %s233 = scalar_select %p232, %s231, 3
    %s234 = sld [smem:[#allocation5 + %s233]]
    %p235 = scmp.gt.s32.totalorder %s234, 0
    %s236 = scalar_select %p235, %s234, 0
    %p237 = scmp.lt.s32.totalorder %s236, 7
    %s238 = scalar_select %p237, %s236, 7
    %s239 = smul.u32 %s233, 8
    %s240 = sadd.s32 %s239, %s238
    %s241 = smul.addr %s240, 16
    %s242 = scalar_lea.hbm %s2, %s241
    %s243 = scalar_lea.vmem [#allocation2], 6
    %s244 = scalar_lea.sflag [#allocation3], 6
    // Predicated region
    $region66: #{tpu_custom_call.1} parent=1 // pred_check
      _
    $region67: #{tpu_custom_call.1} parent=1 // pred_check_branch
      %246 = sbr.rel target = $region69
    $region68: #{tpu_custom_call.1} parent=1 // pred_region
      %247 = sst [smem:[#allocation17]] [#allocation30]
      %248 = sst [smem:[#allocation18]] [#allocation29]
    $region69: #{tpu_custom_call.1} parent=1 // pred_fallthru
      _
    %250 = shalt.err (0)
    %s252 = sshll.u32 %s243, 4
    %s253 = int_to_ptr.vmem [resolvable:$true] %s252
    %255 = dma.hbm_to_vmem [thread:$0]  %s242, 16, %s253, %s244
    %s256 = sadd.s32 %s83, 7
    %p257 = scmp.lt.s32.totalorder %s256, 3
    %s258 = scalar_select %p257, %s256, 3
    %s259 = sld [smem:[#allocation5 + %s258]]
    %p260 = scmp.gt.s32.totalorder %s259, 0
    %s261 = scalar_select %p260, %s259, 0
    %p262 = scmp.lt.s32.totalorder %s261, 7
    %s263 = scalar_select %p262, %s261, 7
    %s264 = smul.u32 %s258, 8
    %s265 = sadd.s32 %s264, %s263
    %s266 = smul.addr %s265, 16
    %s267 = scalar_lea.hbm %s2, %s266
    %s268 = scalar_lea.vmem [#allocation2], 7
    %s269 = scalar_lea.sflag [#allocation3], 7
    // Predicated region
    $region70: #{tpu_custom_call.1} parent=1 // pred_check
      _
    $region71: #{tpu_custom_call.1} parent=1 // pred_check_branch
      %271 = sbr.rel target = $region73
    $region72: #{tpu_custom_call.1} parent=1 // pred_region
      %272 = sst [smem:[#allocation17]] [#allocation32]
      %273 = sst [smem:[#allocation18]] [#allocation31]
    $region73: #{tpu_custom_call.1} parent=1 // pred_fallthru
      _
    %275 = shalt.err (0)
    %s277 = sshll.u32 %s268, 4
    %s278 = int_to_ptr.vmem [resolvable:$true] %s277
    %280 = dma.hbm_to_vmem [thread:$0]  %s267, 16, %s278, %s269
    %v281 = vld [vmem:[#allocation6] sm:$0xff]
    %v282 = vld [vmem:[#allocation9] sm:$0xff]
    %v283 = vld [vmem:[#allocation9 + $0x8] sm:$0xff]
    %v284 = vld [vmem:[#allocation9 + $0x10] sm:$0xff]
    %v285 = vld [vmem:[#allocation9 + $0x18] sm:$0xff]
    %v286 = vld [vmem:[#allocation9 + $0x20] sm:$0xff]
    %v287 = vld [vmem:[#allocation9 + $0x28] sm:$0xff]
    %v288 = vld [vmem:[#allocation9 + $0x30] sm:$0xff]
    %v289 = vld [vmem:[#allocation9 + $0x38] sm:$0xff]
    %v290 = vld [vmem:[#allocation9 + $0x40] sm:$0xff]
    %v291 = vld [vmem:[#allocation9 + $0x48] sm:$0xff]
    %v292 = vld [vmem:[#allocation9 + $0x50] sm:$0xff]
    %v293 = vld [vmem:[#allocation9 + $0x58] sm:$0xff]
    %v294 = vld [vmem:[#allocation9 + $0x60] sm:$0xff]
    %v295 = vld [vmem:[#allocation9 + $0x68] sm:$0xff]
    %v296 = vld [vmem:[#allocation9 + $0x70] sm:$0xff]
    %v297 = vld [vmem:[#allocation9 + $0x78] sm:$0xff]
    %s298 = smul.u32 1, 1
    %s299 = sshll.u32 %s298, 4
    %300 = dma.done [#allocation3], %s299
    %s301 = sshll.u32 %s298, 4
    %302 = dma.done %s119, %s301
    %s303 = sshll.u32 %s298, 4
    %304 = dma.done %s144, %s303
    %s305 = sshll.u32 %s298, 4
    %306 = dma.done %s169, %s305
    %s307 = sshll.u32 %s298, 4
    %308 = dma.done %s194, %s307
    %s309 = sshll.u32 %s298, 4
    %310 = dma.done %s219, %s309
    %s311 = sshll.u32 %s298, 4
    %312 = dma.done %s244, %s311
    %s313 = sshll.u32 %s298, 4
    %314 = dma.done %s269, %s313
    %v315 = vld [vmem:[#allocation2] sm:$0xff]
    %v316 = vld [vmem:[#allocation11] sm:$0xff]
    %v317 = vld [vmem:[#allocation11 + $0x8] sm:$0xff]
    %v318 = vld [vmem:[#allocation11 + $0x10] sm:$0xff]
    %v319 = vld [vmem:[#allocation11 + $0x18] sm:$0xff]
    %v320 = vld [vmem:[#allocation11 + $0x20] sm:$0xff]
    %v321 = vld [vmem:[#allocation11 + $0x28] sm:$0xff]
    %v322 = vld [vmem:[#allocation11 + $0x30] sm:$0xff]
    %v323 = vld [vmem:[#allocation11 + $0x38] sm:$0xff]
    %v324 = vld [vmem:[#allocation11 + $0x40] sm:$0xff]
    %v325 = vld [vmem:[#allocation11 + $0x48] sm:$0xff]
    %v326 = vld [vmem:[#allocation11 + $0x50] sm:$0xff]
    %v327 = vld [vmem:[#allocation11 + $0x58] sm:$0xff]
    %v328 = vld [vmem:[#allocation11 + $0x60] sm:$0xff]
    %v329 = vld [vmem:[#allocation11 + $0x68] sm:$0xff]
    %v330 = vld [vmem:[#allocation11 + $0x70] sm:$0xff]
    %v331 = vld [vmem:[#allocation11 + $0x78] sm:$0xff]
    %332 = vmatprep.subr.mxu0 0.0
    %333 = vmatpush1.msra.mxu0 %v316
    %334 = vmatprep.subr.mxu0 0.0
    %335 = vmatpush1.msra.mxu0 %v317
    %336 = vmatprep.subr.mxu0 0.0
    %337 = vmatpush1.msra.mxu0 %v318
    %338 = vmatprep.subr.mxu0 0.0
    %339 = vmatpush1.msra.mxu0 %v319
    %340 = vmatprep.subr.mxu0 0.0
    %341 = vmatpush1.msra.mxu0 %v320
    %342 = vmatprep.subr.mxu0 0.0
    %343 = vmatpush1.msra.mxu0 %v321
    %344 = vmatprep.subr.mxu0 0.0
    %345 = vmatpush1.msra.mxu0 %v322
    %346 = vmatprep.subr.mxu0 0.0
    %347 = vmatpush1.msra.mxu0 %v323
    %348 = vmatprep.subr.mxu0 0.0
    %349 = vmatpush1.msra.mxu0 %v324
    %350 = vmatprep.subr.mxu0 0.0
    %351 = vmatpush1.msra.mxu0 %v325
    %352 = vmatprep.subr.mxu0 0.0
    %353 = vmatpush1.msra.mxu0 %v326
    %354 = vmatprep.subr.mxu0 0.0
    %355 = vmatpush1.msra.mxu0 %v327
    %356 = vmatprep.subr.mxu0 0.0
    %357 = vmatpush1.msra.mxu0 %v328
    %358 = vmatprep.subr.mxu0 0.0
    %359 = vmatpush1.msra.mxu0 %v329
    %360 = vmatprep.subr.mxu0 0.0
    %361 = vmatpush1.msra.mxu0 %v330
    %362 = vmatprep.subr.mxu0 0.0
    %363 = vmatpush1.msra.mxu0 %v331
    %364 = vmatprep.subr.mxu0 0.0
    %365 = vmatpush1.msra.mxu0 0.0
    %366 = vmatprep.subr.mxu0 0.0
    %367 = vmatpush1.msra.mxu0 0.0
    %368 = vmatprep.subr.mxu0 0.0
    %369 = vmatpush1.msra.mxu0 0.0
    %370 = vmatprep.subr.mxu0 0.0
    %371 = vmatpush1.msra.mxu0 0.0
    %372 = vmatprep.subr.mxu0 0.0
    %373 = vmatpush1.msra.mxu0 0.0
    %374 = vmatprep.subr.mxu0 0.0
    %375 = vmatpush1.msra.mxu0 0.0
    %376 = vmatprep.subr.mxu0 0.0
    %377 = vmatpush1.msra.mxu0 0.0
    %378 = vmatprep.subr.mxu0 0.0
    %379 = vmatpush1.msra.mxu0 0.0
    %380 = vmatprep.subr.mxu0 0.0
    %381 = vmatpush1.msra.mxu0 0.0
    %382 = vmatprep.subr.mxu0 0.0
    %383 = vmatpush1.msra.mxu0 0.0
    %384 = vmatprep.subr.mxu0 0.0
    %385 = vmatpush1.msra.mxu0 0.0
    %386 = vmatprep.subr.mxu0 0.0
    %387 = vmatpush1.msra.mxu0 0.0
    %388 = vmatprep.subr.mxu0 0.0
    %389 = vmatpush1.msra.mxu0 0.0
    %390 = vmatprep.subr.mxu0 0.0
    %391 = vmatpush1.msra.mxu0 0.0
    %392 = vmatprep.subr.mxu0 0.0
    %393 = vmatpush1.msra.mxu0 0.0
    %394 = vmatprep.subr.mxu0 0.0
    %395 = vmatpush1.msra.mxu0 0.0
    %396 = vmatprep.mubr.f32.mxu0 0.0
    %397 = vmatmul.mubr.f32.gmra.mrb[0].mxu0 %v315
    %v398 = vpop.f32.mrb[0].mxu0
    %v399 = vadd.f32 0.0, %v398
    %v400 = vpop.f32.mrb[0].mxu0
    %401 = vdwg.mxu0
    %402 = vmatprep.subr.mxu0 0.0
    %403 = vmatpush1.msra.mxu0 %v282
    %404 = vmatprep.subr.mxu0 0.0
    %405 = vmatpush1.msra.mxu0 %v283
    %406 = vmatprep.subr.mxu0 0.0
    %407 = vmatpush1.msra.mxu0 %v284
    %408 = vmatprep.subr.mxu0 0.0
    %409 = vmatpush1.msra.mxu0 %v285
    %410 = vmatprep.subr.mxu0 0.0
    %411 = vmatpush1.msra.mxu0 %v286
    %412 = vmatprep.subr.mxu0 0.0
    %413 = vmatpush1.msra.mxu0 %v287
    %414 = vmatprep.subr.mxu0 0.0
    %415 = vmatpush1.msra.mxu0 %v288
    %416 = vmatprep.subr.mxu0 0.0
    %417 = vmatpush1.msra.mxu0 %v289
    %418 = vmatprep.subr.mxu0 0.0
    %419 = vmatpush1.msra.mxu0 %v290
    %420 = vmatprep.subr.mxu0 0.0
    %421 = vmatpush1.msra.mxu0 %v291
    %422 = vmatprep.subr.mxu0 0.0
    %423 = vmatpush1.msra.mxu0 %v292
    %424 = vmatprep.subr.mxu0 0.0
    %425 = vmatpush1.msra.mxu0 %v293
    %426 = vmatprep.subr.mxu0 0.0
    %427 = vmatpush1.msra.mxu0 %v294
    %428 = vmatprep.subr.mxu0 0.0
    %429 = vmatpush1.msra.mxu0 %v295
    %430 = vmatprep.subr.mxu0 0.0
    %431 = vmatpush1.msra.mxu0 %v296
    %432 = vmatprep.subr.mxu0 0.0
    %433 = vmatpush1.msra.mxu0 %v297
    %434 = vmatprep.subr.mxu0 0.0
    %435 = vmatpush1.msra.mxu0 0.0
    %436 = vmatprep.subr.mxu0 0.0
    %437 = vmatpush1.msra.mxu0 0.0
    %438 = vmatprep.subr.mxu0 0.0
    %439 = vmatpush1.msra.mxu0 0.0
    %440 = vmatprep.subr.mxu0 0.0
    %441 = vmatpush1.msra.mxu0 0.0
    %442 = vmatprep.subr.mxu0 0.0
    %443 = vmatpush1.msra.mxu0 0.0
    %444 = vmatprep.subr.mxu0 0.0
    %445 = vmatpush1.msra.mxu0 0.0
    %446 = vmatprep.subr.mxu0 0.0
    %447 = vmatpush1.msra.mxu0 0.0
    %448 = vmatprep.subr.mxu0 0.0
    %449 = vmatpush1.msra.mxu0 0.0
    %450 = vmatprep.subr.mxu0 0.0
    %451 = vmatpush1.msra.mxu0 0.0
    %452 = vmatprep.subr.mxu0 0.0
    %453 = vmatpush1.msra.mxu0 0.0
    %454 = vmatprep.subr.mxu0 0.0
    %455 = vmatpush1.msra.mxu0 0.0
    %456 = vmatprep.subr.mxu0 0.0
    %457 = vmatpush1.msra.mxu0 0.0
    %458 = vmatprep.subr.mxu0 0.0
    %459 = vmatpush1.msra.mxu0 0.0
    %460 = vmatprep.subr.mxu0 0.0
    %461 = vmatpush1.msra.mxu0 0.0
    %462 = vmatprep.subr.mxu0 0.0
    %463 = vmatpush1.msra.mxu0 0.0
    %464 = vmatprep.subr.mxu0 0.0
    %465 = vmatpush1.msra.mxu0 0.0
    %466 = vmatprep.mubr.f32.mxu0 0.0
    %467 = vmatmul.mubr.f32.gmra.mrb[0].mxu0 %v281
    %v468 = vpop.f32.mrb[0].mxu0
    %v469 = vadd.f32 %v399, %v468
    %v470 = vpop.f32.mrb[0].mxu0
    %471 = vdwg.mxu0
    %v472 = vld [vmem:[%s5] sm:$0x1]
    %v474 = vlaneseq
    %v475 = vshrl.u32 %v474, 7
    %v476 = vsub.s32 0, %v475
    %v477 = vrot.slane %v472, %v476
    %v479 = vadd.f32 %v469, %v477
    %v480 = vtanh.pop %v479
    %v481 = vld [vmem:[#allocation12] sm:$0xff]
    %v482 = vld [vmem:[#allocation12 + $0x8] sm:$0xff]
    %v483 = vld [vmem:[#allocation12 + $0x10] sm:$0xff]
    %v484 = vld [vmem:[#allocation12 + $0x18] sm:$0xff]
    %v485 = vld [vmem:[#allocation12 + $0x20] sm:$0xff]
    %v486 = vld [vmem:[#allocation12 + $0x28] sm:$0xff]
    %v487 = vld [vmem:[#allocation12 + $0x30] sm:$0xff]
    %v488 = vld [vmem:[#allocation12 + $0x38] sm:$0xff]
    %v489 = vld [vmem:[#allocation12 + $0x40] sm:$0xff]
    %v490 = vld [vmem:[#allocation12 + $0x48] sm:$0xff]
    %v491 = vld [vmem:[#allocation12 + $0x50] sm:$0xff]
    %v492 = vld [vmem:[#allocation12 + $0x58] sm:$0xff]
    %v493 = vld [vmem:[#allocation12 + $0x60] sm:$0xff]
    %v494 = vld [vmem:[#allocation12 + $0x68] sm:$0xff]
    %v495 = vld [vmem:[#allocation12 + $0x70] sm:$0xff]
    %v496 = vld [vmem:[#allocation12 + $0x78] sm:$0xff]
    %v497 = vld [vmem:[%s7] sm:$0x1]
    %v499 = vlaneseq
    %v500 = vshrl.u32 %v499, 7
    %v501 = vsub.s32 0, %v500
    %v502 = vrot.slane %v497, %v501
    %504 = vmatprep.subr.mxu0 0.0
    %505 = vmatpush1.msra.mxu0 %v481
    %506 = vmatprep.subr.mxu0 0.0
    %507 = vmatpush1.msra.mxu0 %v482
    %508 = vmatprep.subr.mxu0 0.0
    %509 = vmatpush1.msra.mxu0 %v483
    %510 = vmatprep.subr.mxu0 0.0
    %511 = vmatpush1.msra.mxu0 %v484
    %512 = vmatprep.subr.mxu0 0.0
    %513 = vmatpush1.msra.mxu0 %v485
    %514 = vmatprep.subr.mxu0 0.0
    %515 = vmatpush1.msra.mxu0 %v486
    %516 = vmatprep.subr.mxu0 0.0
    %517 = vmatpush1.msra.mxu0 %v487
    %518 = vmatprep.subr.mxu0 0.0
    %519 = vmatpush1.msra.mxu0 %v488
    %520 = vmatprep.subr.mxu0 0.0
    %521 = vmatpush1.msra.mxu0 %v489
    %522 = vmatprep.subr.mxu0 0.0
    %523 = vmatpush1.msra.mxu0 %v490
    %524 = vmatprep.subr.mxu0 0.0
    %525 = vmatpush1.msra.mxu0 %v491
    %526 = vmatprep.subr.mxu0 0.0
    %527 = vmatpush1.msra.mxu0 %v492
    %528 = vmatprep.subr.mxu0 0.0
    %529 = vmatpush1.msra.mxu0 %v493
    %530 = vmatprep.subr.mxu0 0.0
    %531 = vmatpush1.msra.mxu0 %v494
    %532 = vmatprep.subr.mxu0 0.0
    %533 = vmatpush1.msra.mxu0 %v495
    %534 = vmatprep.subr.mxu0 0.0
    %535 = vmatpush1.msra.mxu0 %v496
    %536 = vmatprep.subr.mxu0 0.0
    %537 = vmatpush1.msra.mxu0 0.0
    %538 = vmatprep.subr.mxu0 0.0
    %539 = vmatpush1.msra.mxu0 0.0
    %540 = vmatprep.subr.mxu0 0.0
    %541 = vmatpush1.msra.mxu0 0.0
    %542 = vmatprep.subr.mxu0 0.0
    %543 = vmatpush1.msra.mxu0 0.0
    %544 = vmatprep.subr.mxu0 0.0
    %545 = vmatpush1.msra.mxu0 0.0
    %546 = vmatprep.subr.mxu0 0.0
    %547 = vmatpush1.msra.mxu0 0.0
    %548 = vmatprep.subr.mxu0 0.0
    %549 = vmatpush1.msra.mxu0 0.0
    %550 = vmatprep.subr.mxu0 0.0
    %551 = vmatpush1.msra.mxu0 0.0
    %552 = vmatprep.subr.mxu0 0.0
    %553 = vmatpush1.msra.mxu0 0.0
    %554 = vmatprep.subr.mxu0 0.0
    %555 = vmatpush1.msra.mxu0 0.0
    %556 = vmatprep.subr.mxu0 0.0
    %557 = vmatpush1.msra.mxu0 0.0
    %558 = vmatprep.subr.mxu0 0.0
    %559 = vmatpush1.msra.mxu0 0.0
    %560 = vmatprep.subr.mxu0 0.0
    %561 = vmatpush1.msra.mxu0 0.0
    %562 = vmatprep.subr.mxu0 0.0
    %563 = vmatpush1.msra.mxu0 0.0
    %564 = vmatprep.subr.mxu0 0.0
    %565 = vmatpush1.msra.mxu0 0.0
    %566 = vmatprep.subr.mxu0 0.0
    %567 = vmatpush1.msra.mxu0 0.0
    %568 = vmatprep.mubr.f32.mxu0 0.0
    %569 = vmatmul.mubr.f32.gmra.mrb[0].mxu0 %v480
    %v570 = vpop.f32.mrb[0].mxu0
    %v571 = vadd.f32 %v502, %v570
    %v572 = vpop.f32.mrb[0].mxu0
    %573 = vdwg.mxu0
    %574 = vst [vmem:[#allocation14] sm:$0xff] %v571
    // Predicated region
    $region74: #{tpu_custom_call.1} parent=1 // pred_check
      _
    $region75: #{tpu_custom_call.1} parent=1 // pred_check_branch
      %576 = sbr.rel (0) target = $region77
    $region76: #{tpu_custom_call.1} parent=1 // pred_region
      %s578 = ssub.s32 128, 128
      %579 = vsyncadd [#allocation8], %s578
      %s581 = sshll.u32 [#allocation14], 4
      %s582 = int_to_ptr.vmem [resolvable:$true] %s581
      %584 = dma.vmem_to_hbm [thread:$0]  %s582, 128, %s8, [#allocation8]
    $region77: #{tpu_custom_call.1} parent=1 // pred_fallthru
      _
    // Predicated region
    $region78: #{tpu_custom_call.1} parent=1 // pred_check
      _
    $region79: #{tpu_custom_call.1} parent=1 // pred_check_branch
      %586 = sbr.rel (0) target = $region81
    $region80: #{tpu_custom_call.1} parent=1 // pred_region
      %587 = dma.done [#allocation8], 128
    $region81: #{tpu_custom_call.1} parent=1 // pred_fallthru
      _
    %588 = vsyncpa [#allocation7], 1
    %589 = vsyncpa [#allocation10], 1
    %590 = vsyncpa [#allocation13], 1
    %591 = vsyncpa [#allocation8], 1
  %592 = vsyncmov [#allocation3]
  %s593 = vpop.sfrf %592
  %p594 = scmp.eq.s32.totalorder %s593, 0
  %p595 = pneg %p594
  %597 = shalt.err (%p595)
  %s598 = scalar_lea.sflag [#allocation3], 1
  %599 = vsyncmov %s598
  %s600 = vpop.sfrf %599
  %p601 = scmp.eq.s32.totalorder %s600, 0
  %p602 = pneg %p601
  %604 = shalt.err (%p602)
  %s605 = scalar_lea.sflag [#allocation3], 2
  %606 = vsyncmov %s605
  %s607 = vpop.sfrf %606
  %p608 = scmp.eq.s32.totalorder %s607, 0
  %p609 = pneg %p608
  %611 = shalt.err (%p609)
  %s612 = scalar_lea.sflag [#allocation3], 3
  %613 = vsyncmov %s612
  %s614 = vpop.sfrf %613
  %p615 = scmp.eq.s32.totalorder %s614, 0
  %p616 = pneg %p615
  %618 = shalt.err (%p616)
  %s619 = scalar_lea.sflag [#allocation3], 4
  %620 = vsyncmov %s619
  %s621 = vpop.sfrf %620
  %p622 = scmp.eq.s32.totalorder %s621, 0
  %p623 = pneg %p622
  %625 = shalt.err (%p623)
  %s626 = scalar_lea.sflag [#allocation3], 5
  %627 = vsyncmov %s626
  %s628 = vpop.sfrf %627
  %p629 = scmp.eq.s32.totalorder %s628, 0
  %p630 = pneg %p629
  %632 = shalt.err (%p630)
  %s633 = scalar_lea.sflag [#allocation3], 6
  %634 = vsyncmov %s633
  %s635 = vpop.sfrf %634
  %p636 = scmp.eq.s32.totalorder %s635, 0
  %p637 = pneg %p636
  %639 = shalt.err (%p637)
  %s640 = scalar_lea.sflag [#allocation3], 7
  %641 = vsyncmov %s640
  %s642 = vpop.sfrf %641
  %p643 = scmp.eq.s32.totalorder %s642, 0
  %p644 = pneg %p643
  %646 = shalt.err (%p644)

</llo_original>
